<compile_context>
chip_gen: v5e
topology: v5e:2x2
jax: 0.10.0
libtpu: 0.0.40
codegen_flags: <defaults>
</compile_context>

<pallas_src>
import functools
import math

import jax
import jax.numpy as jnp
from jax.experimental import pallas as pl
from jax.experimental.pallas import tpu as pltpu


def _round_up(x, m):
    return (x + m - 1) // m * m


# ---------------------------------------------------------------------------
# pltpu.roll direction probe (run once, outside jit).  Guarantees the sublane
# shift recombination below is correct regardless of the rotate convention.
# ---------------------------------------------------------------------------
def _detect_roll_sign():
    def k(x_ref, o_ref):
        o_ref[...] = pltpu.roll(x_ref[...], shift=1, axis=0)

    x = jnp.broadcast_to(jnp.arange(8, dtype=jnp.float32)[:, None], (8, 128))
    y = pl.pallas_call(k, out_shape=jax.ShapeDtypeStruct((8, 128), jnp.float32))(x)
    if bool(jnp.all(y == jnp.roll(x, 1, axis=0))):
        return 1
    assert bool(jnp.all(y == jnp.roll(x, -1, axis=0))), "unexpected pltpu.roll semantics"
    return -1


# ---------------------------------------------------------------------------
# Fused kernel: 4 x (conv + bias + ReLU), activations resident in VMEM scratch.
#
# Per block: Mb = nb * R rows (R = per-sample zero-haloed (Hp, Wp) grid, padded
# to a sublane-tile multiple).  Interior rows (1<=hp<=H1, 1<=wp<=W) hold data,
# halo/pad rows are 0 and double as the convs' zero padding.  A spatial tap
# (di, dj) is a row shift of di*Wp + dj: di shifts are statically-offset VMEM
# scratch slices (G guard rows on both ends keep them in bounds), dj shifts are
# sublane rolls of the already-dotted, N-concatenated MXU output.
# ---------------------------------------------------------------------------
def _fused_tconv_kernel(x1_ref, w1_ref, b1_ref, w2_ref, b2_ref,
                        w3_ref, b3_ref, w4_ref, b4_ref,
                        o_ref, s1_ref, s2_ref, s3_ref,
                        *, wp, g, mb, nb, r_rows, roll_sign):
    c1 = s1_ref.shape[1]
    c2 = s2_ref.shape[1]
    c3 = s3_ref.shape[1]
    # roll amounts realizing q[r] = p[r-1] / q[r] = p[r+1] (wrap rows are halo
    # rows and get masked to zero, so the wrap-around is harmless).
    sh_m1 = roll_sign % mb
    sh_p1 = (-roll_sign) % mb

    # Zero ONLY the guard rows; every interior row is fully rewritten below.
    def _zero_guards(ref):
        z = jnp.zeros((g, ref.shape[1]), ref.dtype)
        ref[:g, :] = z
        ref[g + mb:, :] = z

    _zero_guards(s1_ref)
    _zero_guards(s2_ref)
    _zero_guards(s3_ref)

    # x1 block: columns 0..5 = layer-1 dilated taps, 6 = interior mask, 7 = 0.
    x1 = x1_ref[...].reshape(mb, 8).astype(jnp.float32)
    mask = x1[:, 6:7]                                        # (Mb, 1) in {0,1}

    # --- layer 1: Conv2d(1, 32, (2,3), dilation=(fs,1), pad=(0,1)) + ReLU ----
    # C_in == 1 -> 6 VPU broadcast multiply-adds, kept off the MXU.
    acc = x1[:, 0:1] * w1_ref[0]
    for k in range(1, 6):
        acc = acc + x1[:, k:k + 1] * w1_ref[k]               # (Mb,1)*(1,C1)
    a1 = jnp.maximum(acc + b1_ref[...], 0.0) * mask
    s1_ref[g:g + mb, :] = a1.astype(s1_ref.dtype)            # bf16 store (once)

    # --- layer 2: Conv2d(32, 64, (3,3), pad=(1,1)) + ReLU --------------------
    # One wide (C1, 3*C2) dot per kernel row di; the dj = -1/0/+1 column blocks
    # are recombined with sublane rolls (no per-tap casts, 3 dots instead of 9).
    acc = None
    for di in range(3):
        base = g + (di - 1) * wp
        p = jnp.dot(s1_ref[base:base + mb, :], w2_ref[di],
                    preferred_element_type=jnp.float32)      # (Mb, 3*C2)
        q = (pltpu.roll(p[:, :c2], shift=sh_m1, axis=0)
             + p[:, c2:2 * c2]
             + pltpu.roll(p[:, 2 * c2:], shift=sh_p1, axis=0))
        acc = q if acc is None else acc + q
    a2 = jnp.maximum(acc + b2_ref[...], 0.0) * mask
    s2_ref[g:g + mb, :] = a2.astype(s2_ref.dtype)            # bf16 store (once)

    # --- layer 3: Conv2d(64, 32, (1,3), pad=(0,1)) + ReLU --------------------
    # Single (C2, 3*C3) dot, two rolls to recombine the dj taps.
    p = jnp.dot(s2_ref[g:g + mb, :], w3_ref[...],
                preferred_element_type=jnp.float32)          # (Mb, 3*C3)
    acc = (pltpu.roll(p[:, :c3], shift=sh_m1, axis=0)
           + p[:, c3:2 * c3]
           + pltpu.roll(p[:, 2 * c3:], shift=sh_p1, axis=0))
    a3 = jnp.maximum(acc + b3_ref[...], 0.0) * mask
    s3_ref[g:g + mb, :] = a3

    # --- layer 4: Conv2d(32, 1, (1,3), pad=(0,1)) + ReLU ---------------------
    # C_out == 1: VPU multiply-accumulate, then ONE cross-lane reduction.
    prod = (s3_ref[g - 1:g - 1 + mb, :] * w4_ref[0]
            + s3_ref[g:g + mb, :] * w4_ref[1]
            + s3_ref[g + 1:g + 1 + mb, :] * w4_ref[2])
    y = jnp.sum(prod, axis=-1, keepdims=True)
    o = jnp.maximum(y + b4_ref[...], 0.0) * mask
    # NOTE: (.,1) output stays lane-sparse; per-block row counts here are tiny,
    # so the lane-dense transposed-store optimization is intentionally skipped.
    o_ref[...] = o.reshape(nb, r_rows, 1)


# ---------------------------------------------------------------------------
# Host-side glue
# ---------------------------------------------------------------------------
def _prepare_inputs(x, feature_size):
    """Layer-1 taps (K=6, kept host-built since C_in==1) + interior mask packed
    as one slim bf16 (N, R, 8) tensor on the zero-haloed flattened grid."""
    N, C, H, W = x.shape
    assert C == 1
    H1 = H - feature_size                  # H_out of the dilated (2,3) conv
    Hp, Wp = H1 + 2, W + 2                 # +1 zero halo ring on every side
    R = _round_up(Hp * Wp, 16)             # per-sample rows, bf16-tile aligned

    xs = x[:, 0].astype(jnp.float32)                           # (N, H, W)
    xw = jnp.pad(xs, ((0, 0), (0, 0), (1, 1)))                 # horizontal pad
    taps = [xw[:, i * feature_size:i * feature_size + H1, j:j + W]
            for i in range(2) for j in range(3)]               # tap t = i*3+j
    col = jnp.stack(taps, axis=-1)                             # (N, H1, W, 6)
    col = jnp.pad(col, ((0, 0), (1, 1), (1, 1), (0, 0)))       # -> (N,Hp,Wp,6)
    mask = jnp.pad(jnp.ones((N, H1, W, 1), jnp.float32),
                   ((0, 0), (1, 1), (1, 1), (0, 0)))           # (N,Hp,Wp,1)
    packed = jnp.concatenate([col, mask, jnp.zeros_like(mask)], axis=-1)
    packed = packed.reshape(N, Hp * Wp, 8)
    packed = jnp.pad(packed, ((0, 0), (0, R - Hp * Wp), (0, 0)))
    return packed.astype(jnp.bfloat16), (N, H1, W, Hp, Wp, R)


def _pick_block_batch(n, r, row_budget):
    """Samples per block: fit the row budget, keep >=2 grid steps when possible
    (so v7x's second TensorCore gets work), and divide N exactly."""
    nb = max(1, min(n, row_budget // max(r, 1)))
    if n >= 2:
        nb = min(nb, max(1, n // 2))
    while n % nb:
        nb -= 1
    return nb


def tconv_encode_forward(x, packed, feature_size, roll_sign, row_budget=4096):
    x1m, (N, H1, W, Hp, Wp, R) = _prepare_inputs(x, feature_size)
    nb = _pick_block_batch(N, R, row_budget)
    steps = N // nb
    G = _round_up(Wp, 16)                  # guard rows >= max scratch row shift
    Mb = nb * R
    Ms = Mb + 2 * G

    c1 = packed["b1"].shape[1]
    c2 = packed["b2"].shape[1]
    c3 = packed["b3"].shape[1]

    weights = (packed["w1"], packed["b1"], packed["w2"], packed["b2"],
               packed["w3"], packed["b3"], packed["w4"], packed["b4"])

    def _const_spec(a):
        nd = a.ndim
        return pl.BlockSpec(a.shape, lambda b, _nd=nd: (0,) * _nd)

    kernel = functools.partial(_fused_tconv_kernel, wp=Wp, g=G, mb=Mb, nb=nb,
                               r_rows=R, roll_sign=roll_sign)

    flops = 2 * N * R * (6 * c1 + 9 * c1 * c2 + 3 * c2 * c3 + 3 * c3)
    bytes_accessed = (int(x1m.size) * x1m.dtype.itemsize
                      + sum(int(a.size) * a.dtype.itemsize for a in weights)
                      + N * R * 4)

    out = pl.pallas_call(
        kernel,
        out_shape=jax.ShapeDtypeStruct((N, R, 1), jnp.float32),
        grid=(steps,),
        in_specs=[pl.BlockSpec((nb, R, 8), lambda b: (b, 0, 0))]
                 + [_const_spec(a) for a in weights],
        out_specs=pl.BlockSpec((nb, R, 1), lambda b: (b, 0, 0)),
        scratch_shapes=[
            pltpu.VMEM((Ms, c1), jnp.bfloat16),   # layer-1 activations (haloed)
            pltpu.VMEM((Ms, c2), jnp.bfloat16),   # layer-2 activations (haloed)
            pltpu.VMEM((Ms, c3), jnp.float32),    # layer-3 activations (haloed)
        ],
        compiler_params=pltpu.CompilerParams(
            dimension_semantics=("parallel",),
            vmem_limit_bytes=56 * 1024 * 1024),
        cost_estimate=pl.CostEstimate(flops=flops, transcendentals=0,
                                      bytes_accessed=bytes_accessed),
    )(x1m, *weights)

    y = out[:, :Hp * Wp, 0].reshape(N, Hp, Wp)[:, 1:1 + H1, 1:1 + W]
    return y[:, None, :, :]                # back to NCHW (N, 1, H1, W)


# ---------------------------------------------------------------------------
# Parameters
# ---------------------------------------------------------------------------
_LAYER_SPECS = [
    # (C_in, C_out, KH, KW)
    (1, 32, 2, 3),    # block1: dilation (feature_size, 1), padding (0, 1)
    (32, 64, 3, 3),   # block2: padding (1, 1)
    (64, 32, 1, 3),   # block3: padding (0, 1)
    (32, 1, 1, 3),    # block4: padding (0, 1)
]


def init_params(key):
    """Deterministic PyTorch-style (uniform +/- 1/sqrt(fan_in)) init, OIHW."""
    params = []
    for i, (cin, cout, kh, kw) in enumerate(_LAYER_SPECS):
        kw_key, kb_key = jax.random.split(jax.random.fold_in(key, i))
        bound = 1.0 / math.sqrt(cin * kh * kw)
        w = jax.random.uniform(kw_key, (cout, cin, kh, kw), jnp.float32,
                               minval=-bound, maxval=bound)
        b = jax.random.uniform(kb_key, (cout,), jnp.float32,
                               minval=-bound, maxval=bound)
        params.append((w, b))
    return params


def pack_params(params):
    """One-time conversion of OIHW weights to the kernel's layout: layer-1/4
    tap rows for the VPU (f32), N-concatenated tap matrices for the MXU layers
    (bf16): layer 2 -> (3, C1, 3*C2), layer 3 -> (C2, 3*C3)."""
    (w1, b1), (w2, b2), (w3, b3), (w4, b4) = params
    c1, c2, c3 = w1.shape[0], w2.shape[0], w3.shape[0]

    w1p = w1.reshape(c1, 6).T.reshape(6, 1, c1).astype(jnp.float32)        # VPU

    w2t = jnp.transpose(w2, (2, 3, 1, 0))                    # (3,3,C1,C2)
    w2p = jnp.concatenate([w2t[:, j] for j in range(3)],
                          axis=-1).astype(jnp.bfloat16)      # (3, C1, 3*C2)

    w3t = jnp.transpose(w3, (2, 3, 1, 0))                    # (1,3,C2,C3)
    w3p = jnp.concatenate([w3t[0, j] for j in range(3)],
                          axis=-1).astype(jnp.bfloat16)      # (C2, 3*C3)

    w4p = jnp.transpose(w4, (3, 0, 2, 1)).reshape(3, 1, c3).astype(jnp.float32)

    return dict(
        w1=w1p, b1=b1.reshape(1, c1).astype(jnp.float32),
        w2=w2p, b2=b2.reshape(1, c2).astype(jnp.float32),
        w3=w3p, b3=b3.reshape(1, c3).astype(jnp.float32),
        w4=w4p, b4=b4.reshape(1, 1).astype(jnp.float32),
    )


# ---------------------------------------------------------------------------
# Pure-JAX reference (lax conv, f32) for correctness checking
# ---------------------------------------------------------------------------
def _conv_relu_ref(x, w, b, dilation, padding):
    y = jax.lax.conv_general_dilated(
        x, w, window_strides=(1, 1),
        padding=((padding[0], padding[0]), (padding[1], padding[1])),
        rhs_dilation=dilation,
        dimension_numbers=("NCHW", "OIHW", "NCHW"))
    return jnp.maximum(y + b[None, :, None, None], 0.0)


def tconv_encode_reference(x, params, feature_size):
    (w1, b1), (w2, b2), (w3, b3), (w4, b4) = params
    x = _conv_relu_ref(x, w1, b1, (feature_size, 1), (0, 1))
    x = _conv_relu_ref(x, w2, b2, (1, 1), (1, 1))
    x = _conv_relu_ref(x, w3, b3, (1, 1), (0, 1))
    x = _conv_relu_ref(x, w4, b4, (1, 1), (0, 1))
    return x


if __name__ == "__main__":
    key = jax.random.PRNGKey(0)
    k_x, k_p = jax.random.split(key)

    feature_size = 4
    N, H, W = 2, 2 * feature_size, 7           # (batch, 1, 2*feature_size, 7 days)
    x = jax.random.normal(k_x, (N, 1, H, W), jnp.float32)

    params = init_params(k_p)
    packed = pack_params(params)

    roll_sign = _detect_roll_sign()
    fwd = jax.jit(functools.partial(tconv_encode_forward,
                                    feature_size=feature_size,
                                    roll_sign=roll_sign))
    out = jax.block_until_ready(fwd(x, packed))

    ref = tconv_encode_reference(x, params, feature_size)
    assert out.shape == (N, 1, H - feature_size, W), out.shape
    # bf16 layer-1 taps + bf16 MXU operands (f32 accumulate everywhere) ->
    # tolerance loosened vs. the all-f32 lax reference.
    err = float(jnp.max(jnp.abs(out - ref)))
    assert jnp.allclose(out, ref, atol=3e-2, rtol=3e-2), err

    print("KERNEL_OK")
</pallas_src>

<mosaic_0001>
module attributes {stable_mosaic.version = 11 : i64} {
  func.func @k(%arg0: memref<8x128xf32, #tpu.memory_space<vmem>>, %arg1: memref<8x128xf32, #tpu.memory_space<vmem>>) attributes {dimension_semantics = [], scalar_prefetch = 0 : i64, scratch_operands = 0 : i64, tpu.core_type = #tpu.core_type<tc>} {
    %c0 = arith.constant 0 : index
    %c0_0 = arith.constant 0 : index
    %0 = vector.load %arg0[%c0, %c0_0] : memref<8x128xf32, #tpu.memory_space<vmem>>, vector<8x128xf32>
    %c1_i32 = arith.constant 1 : i32
    %1 = tpu.dynamic_rotate %0 by %c1_i32 dim 0 : vector<8x128xf32>, i32 -> vector<8x128xf32>
    %c0_1 = arith.constant 0 : index
    %c0_2 = arith.constant 0 : index
    %2 = vector.load %arg1[%c0_1, %c0_2] : memref<8x128xf32, #tpu.memory_space<vmem>>, vector<8x128xf32>
    tpu.vector_store %arg1[%c0_1, %c0_2], %1 {strides = array<i32>} : memref<8x128xf32, #tpu.memory_space<vmem>>, vector<8x128xf32>,
    return
  }
}

</mosaic_0001>

<llo_original>
// kernel: tpu_custom_call.1
$region0: #{tpu_custom_call.1}
  #allocation0 [shape = 'u32[]', space=smem, size = 0x4, offset = 0x4, fixed_abs, tag = 'smem constant byte address 0x4 - core index']
  #allocation1 [shape = 'u32[72,128]{1,0:T(1,128)}', space=vmem, size = 0x9000, scoped, tag = 'internal scratch']
  %s0 = inlined_call_operand.hbm [shape: f32[8,128], index: 0, kind: input, shape index: {}]
  %s1 = inlined_call_operand.hbm [shape: f32[8,128], index: 1, kind: output, shape index: {}]
  %s2 = sld [smem:[#allocation0]]
  $region18: #{tpu_custom_call.1} parent=0
    _
  %s4 = ssub.s32 1, %s2
  %s5 = scalar_select 0, %s4, %s2
  $region1: #{tpu_custom_call.1} parent=0
    #allocation2 [shape = 'u8[4096]{0}', space=vmem, size = 0x1000, scoped, tag = 'input window, operand 0, single buffered']
    #allocation3 [shape = 's32[1]{0}', space=sflag, size = 0x4, scoped, tag = 'scoped memory for tpu_custom_call.1']
    #allocation4 [shape = 's32[1]{0}', space=sflag, size = 0x4, scoped, tag = 'scoped memory for tpu_custom_call.1']
    #allocation5 [shape = 'u8[4096]{0}', space=vmem, size = 0x1000, scoped, tag = 'output window, operand 0, single buffered']
    %6 = vsyncpa [#allocation3], 0
    %7 = vsyncpa [#allocation4], 0
    // Predicated region
    $region2: #{tpu_custom_call.1} parent=1 // pred_check
      _
    $region3: #{tpu_custom_call.1} parent=1 // pred_check_branch
      %9 = sbr.rel (0) target = $region5
    $region4: #{tpu_custom_call.1} parent=1 // pred_region
      %11 = vsyncadd [#allocation3], 0
      %s13 = sshll.u32 %s0, 4
      %s14 = int_to_ptr.hbm [resolvable:$true] %s13
      %s15 = sshll.u32 [#allocation2], 4
      %s16 = int_to_ptr.vmem [resolvable:$true] %s15
      %18 = dma.hbm_to_vmem [thread:$0]  %s14, 128, %s16, [#allocation3]
    $region5: #{tpu_custom_call.1} parent=1 // pred_fallthru
      _
    // Predicated region
    $region6: #{tpu_custom_call.1} parent=1 // pred_check
      _
    $region7: #{tpu_custom_call.1} parent=1 // pred_check_branch
      %20 = sbr.rel (0) target = $region9
    $region8: #{tpu_custom_call.1} parent=1 // pred_region
      %22 = dma.done [#allocation3], 128
    $region9: #{tpu_custom_call.1} parent=1 // pred_fallthru
      _
    %v23 = vld [vmem:[#allocation2] sm:$0xff]
    %v24 = vrot.slane %v23, 7
    %25 = vst [vmem:[#allocation5] sm:$0xff] %v24
    // Predicated region
    $region10: #{tpu_custom_call.1} parent=1 // pred_check
      _
    $region11: #{tpu_custom_call.1} parent=1 // pred_check_branch
      %27 = sbr.rel (0) target = $region13
    $region12: #{tpu_custom_call.1} parent=1 // pred_region
      %29 = vsyncadd [#allocation4], 0
      %s31 = sshll.u32 [#allocation5], 4
      %s32 = int_to_ptr.vmem [resolvable:$true] %s31
      %s33 = sshll.u32 %s1, 4
      %s34 = int_to_ptr.hbm [resolvable:$true] %s33
      %36 = dma.vmem_to_hbm [thread:$0]  %s32, 128, %s34, [#allocation4]
    $region13: #{tpu_custom_call.1} parent=1 // pred_fallthru
      _
    // Predicated region
    $region14: #{tpu_custom_call.1} parent=1 // pred_check
      _
    $region15: #{tpu_custom_call.1} parent=1 // pred_check_branch
      %38 = sbr.rel (0) target = $region17
    $region16: #{tpu_custom_call.1} parent=1 // pred_region
      %40 = dma.done [#allocation4], 128
    $region17: #{tpu_custom_call.1} parent=1 // pred_fallthru
      _
    %41 = vsyncpa [#allocation3], 1
    %42 = vsyncpa [#allocation4], 1

</llo_original>
